<compile_context>
chip_gen: v7x
topology: tpu7x:2x2x1
jax: 0.10.0
libtpu: 0.0.40
codegen_flags: <defaults>
</compile_context>

<pallas_src>
import jax
import jax.numpy as jnp
from jax.experimental import pallas as pl
from jax.experimental.pallas import tpu as pltpu


def _round_up(a, b):
    return ((a + b - 1) // b) * b


def _make_maxout_kernel(pool_size, hw):
    def kernel(x_ref, o_ref):
        # x_ref: (TILE_N, pool*hw) VMEM tile; o_ref: (TILE_N, hw) VMEM tile.
        # Pool members live in static lane chunks -> pure, unrolled VPU max.
        acc = x_ref[:, 0:hw]
        for p in range(1, pool_size):
            acc = jnp.maximum(acc, x_ref[:, p * hw:(p + 1) * hw])
        o_ref[...] = acc
    return kernel


def maxout(x, pool_size, *, target_tile_bytes=4 * 1024 * 1024):
    """Maxout over the channel axis of an NCHW tensor using a Pallas TPU kernel."""
    B, C, H, W = x.shape
    assert C % pool_size == 0, "channels must be divisible by pool_size"
    c_out = C // pool_size
    N = B * c_out
    HW = H * W
    itemsize = jnp.dtype(x.dtype).itemsize

    # Contiguous reshape (no data movement): (B, C, H, W) -> (B*c_out, pool*H*W).
    x_flat = x.reshape(N, pool_size * HW)

    # TILE_N is the second-minor dim of both blocks: keep it a multiple of the
    # sublane packing (8 f32 / 16 bf16 / 32 int8), sized for ~target_tile_bytes
    # of input per (double-buffered) tile.
    packing = max(1, 4 // itemsize)
    sub = 8 * packing
    bytes_per_row = pool_size * HW * itemsize
    tile_n = max(sub, (target_tile_bytes // max(1, bytes_per_row)) // sub * sub)
    if tile_n >= N:
        if N >= 2 * sub:
            # Keep at least two grid steps so v7x's 2 TensorCores can split rows.
            tile_n = _round_up((N + 1) // 2, sub)
        else:
            tile_n = N  # tiny case: block equals full array (always legal)
    grid_n = pl.cdiv(N, tile_n)

    in_bytes = N * pool_size * HW * itemsize
    out_bytes = N * HW * itemsize
    # 2x (double-buffered) input + output tiles, plus headroom; capped at 32 MiB,
    # which is within the scoped VMEM budget on all of v5e / v6e / v7x.
    vmem_needed = 2 * tile_n * (pool_size * HW + HW) * itemsize
    vmem_limit = int(min(32 * 1024 * 1024, max(vmem_needed + (4 << 20), 16 << 20)))

    out_flat = pl.pallas_call(
        _make_maxout_kernel(pool_size, HW),
        out_shape=jax.ShapeDtypeStruct((N, HW), x.dtype),
        grid_spec=pltpu.PrefetchScalarGridSpec(
            num_scalar_prefetch=0,
            grid=(grid_n,),
            in_specs=[pl.BlockSpec((tile_n, pool_size * HW), lambda i: (i, 0))],
            out_specs=pl.BlockSpec((tile_n, HW), lambda i: (i, 0)),
        ),
        compiler_params=pltpu.CompilerParams(
            dimension_semantics=("parallel",),
            vmem_limit_bytes=vmem_limit,
        ),
        cost_estimate=pl.CostEstimate(
            flops=N * (pool_size - 1) * HW,
            transcendentals=0,
            bytes_accessed=in_bytes + out_bytes,
        ),
    )(x_flat)

    return out_flat.reshape(B, c_out, H, W)


if __name__ == "__main__":
    key = jax.random.PRNGKey(0)
    B, C, H, W = 2, 4, 16, 16
    pool_size = 2

    x = jax.random.normal(key, (B, C, H, W), dtype=jnp.float32)

    out = jax.block_until_ready(maxout(x, pool_size))

    # Reference check (pure JAX, mirrors the PyTorch reshape + max semantics).
    ref = jnp.max(x.reshape(B, C // pool_size, pool_size, H, W), axis=2)
    assert out.shape == (B, C // pool_size, H, W)
    assert jnp.allclose(out, ref), "Pallas maxout mismatch vs reference"

    print("KERNEL_OK")
</pallas_src>

<mosaic_0001>
module attributes {stable_mosaic.version = 11 : i64} {
  func.func @kernel(%arg0: i32, %arg1: memref<4x512xf32, #tpu.memory_space<vmem>>, %arg2: memref<4x256xf32, #tpu.memory_space<vmem>>) attributes {dimension_semantics = [#tpu.dimension_semantics<parallel>], iteration_bounds = array<i64: 1>, scalar_prefetch = 0 : i64, scratch_operands = 0 : i64, tpu.core_type = #tpu.core_type<tc>, window_params = [{transform_indices = @transform_0, window_bounds = array<i64: 4, 512>}, {transform_indices = @transform_1, window_bounds = array<i64: 4, 256>}]} {
    %c0 = arith.constant 0 : index
    %c0_0 = arith.constant 0 : index
    %0 = vector.load %arg1[%c0, %c0_0] : memref<4x512xf32, #tpu.memory_space<vmem>>, vector<4x256xf32>
    %c0_1 = arith.constant 0 : index
    %c256 = arith.constant 256 : index
    %1 = vector.load %arg1[%c0_1, %c256] : memref<4x512xf32, #tpu.memory_space<vmem>>, vector<4x256xf32>
    %2 = arith.maximumf %0, %1 : vector<4x256xf32>
    %c0_2 = arith.constant 0 : index
    %c0_3 = arith.constant 0 : index
    %3 = vector.load %arg2[%c0_2, %c0_3] : memref<4x256xf32, #tpu.memory_space<vmem>>, vector<4x256xf32>
    tpu.vector_store %arg2[%c0_2, %c0_3], %2 {strides = array<i32>} : memref<4x256xf32, #tpu.memory_space<vmem>>, vector<4x256xf32>,
    return
  }
  func.func @transform_0(%arg0: i32) -> (i32, i32) {
    %c0_i32 = arith.constant 0 : i32
    %c0_i32_0 = arith.constant 0 : i32
    return %arg0, %c0_i32 : i32, i32
  }
  func.func @transform_1(%arg0: i32) -> (i32, i32) {
    %c0_i32 = arith.constant 0 : i32
    %c0_i32_0 = arith.constant 0 : i32
    return %arg0, %c0_i32 : i32, i32
  }
}

</mosaic_0001>

<llo_original>
// kernel: tpu_custom_call.1
$region0: #{tpu_custom_call.1}
  #allocation0 [shape = 'u32[]', space=smem, size = 0x4, offset = 0x4, fixed_abs, tag = 'smem constant byte address 0x4 - core index']
  #allocation1 [shape = 'u32[144,128]{1,0:T(1,128)}', space=vmem, size = 0x12000, scoped, tag = 'internal scratch']
  %s0 = inlined_call_operand.hbm [shape: f32[4,512], index: 0, kind: input, shape index: {}]
  %s1 = inlined_call_operand.hbm [shape: f32[4,256], index: 1, kind: output, shape index: {}]
  %s2 = sld [smem:[#allocation0]]
  $region18: #{tpu_custom_call.1} parent=0
    _
  %s4 = ssub.s32 1, %s2
  %s5 = scalar_select 0, %s4, %s2
  $region1: #{tpu_custom_call.1} parent=0
    #allocation2 [shape = 'u8[8192]{0}', space=vmem, size = 0x2000, scoped, tag = 'input window, operand 0, single buffered']
    #allocation3 [shape = 's32[1]{0}', space=sflag, size = 0x4, scoped, tag = 'scoped memory for tpu_custom_call.1']
    #allocation4 [shape = 's32[1]{0}', space=sflag, size = 0x4, scoped, tag = 'scoped memory for tpu_custom_call.1']
    #allocation5 [shape = 'u8[4096]{0}', space=vmem, size = 0x1000, scoped, tag = 'output window, operand 0, single buffered']
    %6 = vsyncpa [#allocation3], 0
    %7 = vsyncpa [#allocation4], 0
    // Predicated region
    $region2: #{tpu_custom_call.1} parent=1 // pred_check
      _
    $region3: #{tpu_custom_call.1} parent=1 // pred_check_branch
      %9 = sbr.rel (0) target = $region5
    $region4: #{tpu_custom_call.1} parent=1 // pred_region
      %s11 = ssub.s32 256, 256
      %12 = vsyncadd [#allocation3], %s11
      %s14 = sshll.u32 [#allocation2], 4
      %s15 = int_to_ptr.vmem [resolvable:$true] %s14
      %17 = dma.hbm_to_vmem [thread:$0]  %s0, 256, %s15, [#allocation3]
    $region5: #{tpu_custom_call.1} parent=1 // pred_fallthru
      _
    // Predicated region
    $region6: #{tpu_custom_call.1} parent=1 // pred_check
      _
    $region7: #{tpu_custom_call.1} parent=1 // pred_check_branch
      %19 = sbr.rel (0) target = $region9
    $region8: #{tpu_custom_call.1} parent=1 // pred_region
      %20 = dma.done [#allocation3], 256
    $region9: #{tpu_custom_call.1} parent=1 // pred_fallthru
      _
    %v21 = vld [vmem:[#allocation2] sm:$0xff]
    %v22 = vld [vmem:[#allocation2 + $0x8] sm:$0xff]
    %v23 = vmax.f32 %v21, %v22
    %24 = vst [vmem:[#allocation5] sm:$0xff] %v23
    // Predicated region
    $region10: #{tpu_custom_call.1} parent=1 // pred_check
      _
    $region11: #{tpu_custom_call.1} parent=1 // pred_check_branch
      %26 = sbr.rel (0) target = $region13
    $region12: #{tpu_custom_call.1} parent=1 // pred_region
      %s28 = ssub.s32 128, 128
      %29 = vsyncadd [#allocation4], %s28
      %s31 = sshll.u32 [#allocation5], 4
      %s32 = int_to_ptr.vmem [resolvable:$true] %s31
      %34 = dma.vmem_to_hbm [thread:$0]  %s32, 128, %s1, [#allocation4]
    $region13: #{tpu_custom_call.1} parent=1 // pred_fallthru
      _
    // Predicated region
    $region14: #{tpu_custom_call.1} parent=1 // pred_check
      _
    $region15: #{tpu_custom_call.1} parent=1 // pred_check_branch
      %36 = sbr.rel (0) target = $region17
    $region16: #{tpu_custom_call.1} parent=1 // pred_region
      %37 = dma.done [#allocation4], 128
    $region17: #{tpu_custom_call.1} parent=1 // pred_fallthru
      _
    %38 = vsyncpa [#allocation3], 1
    %39 = vsyncpa [#allocation4], 1

</llo_original>
